<compile_context>
chip_gen: v7x
topology: tpu7x:2x2x1
jax: 0.10.0
libtpu: 0.0.40
codegen_flags: <defaults>
</compile_context>

<pallas_src>
import functools

import jax
import jax.numpy as jnp
from jax import lax
from jax.experimental import pallas as pl
from jax.experimental.pallas import tpu as pltpu


def _nca_loss_kernel(im_ref, s_ref, terms_ref, gram_acc, im_ss, s_ss,
                     *, alpha, beta, ep, bsize, col_tile):
    j = pl.program_id(0)                 # score-column tile (parallel)
    k = pl.program_id(1)                 # feature tile (reduction)
    nk = pl.num_programs(1)

    im_blk = im_ref[...].astype(jnp.float32)      # (B, tk)
    s_blk = s_ref[...].astype(jnp.float32)        # (col_tile, tk)

    @pl.when(k == 0)
    def _init():
        gram_acc[...] = jnp.zeros_like(gram_acc)
        im_ss[...] = jnp.zeros_like(im_ss)
        s_ss[...] = jnp.zeros_like(s_ss)

    # Raw gram accumulation: contract the feature axis of both operands
    # directly (no materialized transpose of s).
    gram_acc[...] += lax.dot_general(
        im_blk, s_blk,
        dimension_numbers=(((1,), (1,)), ((), ())),
        preferred_element_type=jnp.float32)                      # (B, col_tile)

    # Per-row sum of squares of im (kept as a (B, 1) column).
    im_ss[...] += jnp.sum(im_blk * im_blk, axis=1, keepdims=True)

    # Per-row sum of squares of s, accumulated directly in (1, col_tile) lane
    # layout via a ones-row matmul (no sublane->lane relayout later).
    tk = s_blk.shape[1]
    s_sq = s_blk * s_blk
    s_ss[...] += lax.dot_general(
        jnp.ones((1, tk), jnp.float32), s_sq,
        dimension_numbers=(((1,), (1,)), ((), ())),
        preferred_element_type=jnp.float32)                      # (1, col_tile)

    @pl.when(k == nk - 1)
    def _finalize():
        inv_im = lax.rsqrt(im_ss[...])                           # (B, 1)
        inv_s = lax.rsqrt(s_ss[...])                             # (1, col_tile)
        scores = gram_acc[...] * inv_im * inv_s                  # cosine sims

        rows = lax.broadcasted_iota(jnp.int32, (bsize, col_tile), 0)
        cols = lax.broadcasted_iota(jnp.int32, (bsize, col_tile), 1)
        diag_mask = rows == (cols + j * col_tile)

        # s_diag.sum(0)[col] == beta * scores[col_global, col]
        d = beta * jnp.sum(jnp.where(diag_mask, scores, 0.0),
                           axis=0, keepdims=True)                # (1, col_tile)

        # scores_ori: diagonal scaled by (1 - beta), off-diagonal untouched.
        scores_ori = jnp.where(diag_mask, scores * (1.0 - beta), scores)

        s_exp = jnp.exp(alpha * (scores_ori - ep))               # EUP
        col_sum = jnp.sum(s_exp, axis=0, keepdims=True)          # (1, col_tile)

        terms_ref[...] = (jnp.log(1.0 + col_sum) / alpha
                          - jnp.log(1.0 + jnp.maximum(d, 0.0)))


def _select_tiles(B, D, *, budget_bytes=20 * 1024 * 1024):
    """Largest lane/MXU-friendly tiles (divisors) fitting a VMEM budget."""
    tn_cands = [t for t in (512, 256, 128) if B >= t and B % t == 0] or [B]
    tk_cands = [t for t in (2048, 1024, 512, 256, 128)
                if D >= t and D % t == 0] or [D]
    best = (tn_cands[-1], tk_cands[-1])
    for tn in tn_cands:              # prefer wide column tiles (fewer im re-fetches)
        for tk in tk_cands:          # then the longest contraction tiles
            vmem = 4 * (2 * (B * tk + tn * tk)   # double-buffered input blocks
                        + B * tn + B + tn        # scratch accumulators
                        + 2 * tn)                # double-buffered output block
            if vmem <= budget_bytes:
                return tn, tk
    return best


def nca_loss(im, s, *, alpha, beta, ep):
    """Pallas implementation of NCA_loss.forward(im, s). Returns a scalar."""
    assert im.ndim == 2 and im.shape == s.shape
    B, D = im.shape

    tn, tk = _select_tiles(B, D)

    kernel = functools.partial(
        _nca_loss_kernel,
        alpha=float(alpha), beta=float(beta), ep=float(ep),
        bsize=B, col_tile=tn)

    terms = pl.pallas_call(
        kernel,
        out_shape=jax.ShapeDtypeStruct((1, B), jnp.float32),
        grid_spec=pltpu.PrefetchScalarGridSpec(
            num_scalar_prefetch=0,
            grid=(B // tn, D // tk),
            in_specs=[
                pl.BlockSpec((B, tk), lambda j, k: (0, k)),   # im: all rows
                pl.BlockSpec((tn, tk), lambda j, k: (j, k)),  # s: column tile
            ],
            out_specs=pl.BlockSpec((1, tn), lambda j, k: (0, j)),
            scratch_shapes=[
                pltpu.VMEM((B, tn), jnp.float32),   # gram accumulator
                pltpu.VMEM((B, 1), jnp.float32),    # |im_i|^2 accumulator
                pltpu.VMEM((1, tn), jnp.float32),   # |s_j|^2 accumulator
            ],
        ),
        compiler_params=pltpu.CompilerParams(
            dimension_semantics=("parallel", "arbitrary"),
            vmem_limit_bytes=32 * 1024 * 1024,
        ),
    )(im, s)

    # Tiny final reduction (B elements) stays in the wrapper; folding it into
    # the kernel would serialize the parallel column axis.
    return jnp.sum(terms) / B


def _nca_loss_ref(im, s, *, alpha, beta, ep):
    """Plain-JAX reference mirroring the PyTorch forward, for validation."""
    im = im.astype(jnp.float32)
    s = s.astype(jnp.float32)
    im = im / jnp.sqrt(jnp.sum(im * im, axis=1, keepdims=True))
    s = s / jnp.sqrt(jnp.sum(s * s, axis=1, keepdims=True))
    B = im.shape[0]
    scores = im @ s.T
    s_diag = jnp.eye(B, dtype=scores.dtype) * scores * beta
    scores_ori = scores - s_diag
    s_exp = jnp.exp(alpha * (scores_ori - ep))
    loss = jnp.sum(
        jnp.log(1.0 + jnp.sum(s_exp, axis=0)) / alpha
        - jnp.log(1.0 + jnp.maximum(jnp.sum(s_diag, axis=0), 0.0))
    ) / B
    return loss


if __name__ == "__main__":
    # NCA_loss(alpha, beta, ep) hyper-parameters (deterministic constants).
    alpha, beta, ep = 30.0, 0.5, 0.1

    key = jax.random.PRNGKey(0)
    k_im, k_s, k_im2, k_s2 = jax.random.split(key, 4)

    # Small case: batch=8 image/sentence embeddings, hidden dim 32
    # (single-tile grid, full-extent blocks).
    im = jax.random.normal(k_im, (8, 32), dtype=jnp.float32)
    s = jax.random.normal(k_s, (8, 32), dtype=jnp.float32)

    loss = nca_loss(im, s, alpha=alpha, beta=beta, ep=ep)
    jax.block_until_ready(loss)
    ref = _nca_loss_ref(im, s, alpha=alpha, beta=beta, ep=ep)
    jax.block_until_ready(ref)
    assert jnp.allclose(loss, ref, rtol=1e-4, atol=1e-5), (loss, ref)

    # Larger case exercising both grid axes and the scratch accumulation /
    # finalize path.
    im2 = jax.random.normal(k_im2, (512, 1024), dtype=jnp.float32)
    s2 = jax.random.normal(k_s2, (512, 1024), dtype=jnp.float32)

    loss2 = nca_loss(im2, s2, alpha=alpha, beta=beta, ep=ep)
    jax.block_until_ready(loss2)
    ref2 = _nca_loss_ref(im2, s2, alpha=alpha, beta=beta, ep=ep)
    jax.block_until_ready(ref2)
    assert jnp.allclose(loss2, ref2, rtol=1e-4, atol=1e-5), (loss2, ref2)

    print("KERNEL_OK")
</pallas_src>

<mosaic_0001>
module attributes {stable_mosaic.version = 11 : i64} {
  func.func @_nca_loss_kernel(%arg0: i32, %arg1: i32, %arg2: memref<8x32xf32, #tpu.memory_space<vmem>>, %arg3: memref<8x32xf32, #tpu.memory_space<vmem>>, %arg4: memref<1x8xf32, #tpu.memory_space<vmem>>, %arg5: memref<8x8xf32, #tpu.memory_space<vmem>>, %arg6: memref<8x1xf32, #tpu.memory_space<vmem>>, %arg7: memref<1x8xf32, #tpu.memory_space<vmem>>) attributes {dimension_semantics = [#tpu.dimension_semantics<parallel>, #tpu.dimension_semantics<arbitrary>], iteration_bounds = array<i64: 1, 1>, scalar_prefetch = 0 : i64, scratch_operands = 3 : i64, tpu.core_type = #tpu.core_type<tc>, window_params = [{transform_indices = @transform_0, window_bounds = array<i64: 8, 32>}, {transform_indices = @transform_1, window_bounds = array<i64: 8, 32>}, {transform_indices = @transform_2, window_bounds = array<i64: 1, 8>}]} {
    %c0 = arith.constant 0 : index
    %c0_0 = arith.constant 0 : index
    %0 = vector.load %arg2[%c0, %c0_0] : memref<8x32xf32, #tpu.memory_space<vmem>>, vector<8x32xf32>
    %c0_1 = arith.constant 0 : index
    %c0_2 = arith.constant 0 : index
    %1 = vector.load %arg3[%c0_1, %c0_2] : memref<8x32xf32, #tpu.memory_space<vmem>>, vector<8x32xf32>
    %c0_i32 = arith.constant 0 : i32
    %2 = arith.cmpi eq, %arg1, %c0_i32 : i32
    %3 = arith.extui %2 : i1 to i32
    %c0_i32_3 = arith.constant 0 : i32
    %4 = arith.cmpi ne, %3, %c0_i32_3 : i32
    scf.if %4 {
      %cst_21 = arith.constant 0.000000e+00 : f32
      %24 = vector.broadcast %cst_21 : f32 to vector<8x8xf32>
      %c0_22 = arith.constant 0 : index
      %c0_23 = arith.constant 0 : index
      %25 = vector.load %arg5[%c0_22, %c0_23] : memref<8x8xf32, #tpu.memory_space<vmem>>, vector<8x8xf32>
      tpu.vector_store %arg5[%c0_22, %c0_23], %24 {strides = array<i32>} : memref<8x8xf32, #tpu.memory_space<vmem>>, vector<8x8xf32>,
      %cst_24 = arith.constant 0.000000e+00 : f32
      %26 = vector.broadcast %cst_24 : f32 to vector<8x1xf32>
      %c0_25 = arith.constant 0 : index
      %c0_26 = arith.constant 0 : index
      %27 = vector.load %arg6[%c0_25, %c0_26] : memref<8x1xf32, #tpu.memory_space<vmem>>, vector<8x1xf32>
      tpu.vector_store %arg6[%c0_25, %c0_26], %26 {strides = array<i32>} : memref<8x1xf32, #tpu.memory_space<vmem>>, vector<8x1xf32>,
      %cst_27 = arith.constant 0.000000e+00 : f32
      %28 = vector.broadcast %cst_27 : f32 to vector<1x8xf32>
      %c0_28 = arith.constant 0 : index
      %c0_29 = arith.constant 0 : index
      %29 = vector.load %arg7[%c0_28, %c0_29] : memref<1x8xf32, #tpu.memory_space<vmem>>, vector<1x8xf32>
      tpu.vector_store %arg7[%c0_28, %c0_29], %28 {strides = array<i32>} : memref<1x8xf32, #tpu.memory_space<vmem>>, vector<1x8xf32>,
    } else {
    }
    %c0_4 = arith.constant 0 : index
    %c0_5 = arith.constant 0 : index
    %5 = vector.load %arg5[%c0_4, %c0_5] : memref<8x8xf32, #tpu.memory_space<vmem>>, vector<8x8xf32>
    %cst = arith.constant dense<0.000000e+00> : vector<8x8xf32>
    %6 = tpu.matmul %0, %1, %cst {dimension_numbers = #tpu.dot_dimension_numbers<[1], [1], [0], [0], [0, 0, 1, 0], [], []>} : vector<8x32xf32>, vector<8x32xf32>, vector<8x8xf32> -> vector<8x8xf32>
    %7 = arith.addf %5, %6 : vector<8x8xf32>
    %c0_6 = arith.constant 0 : index
    %c0_7 = arith.constant 0 : index
    %8 = vector.load %arg5[%c0_6, %c0_7] : memref<8x8xf32, #tpu.memory_space<vmem>>, vector<8x8xf32>
    tpu.vector_store %arg5[%c0_6, %c0_7], %7 {strides = array<i32>} : memref<8x8xf32, #tpu.memory_space<vmem>>, vector<8x8xf32>,
    %c0_8 = arith.constant 0 : index
    %c0_9 = arith.constant 0 : index
    %9 = vector.load %arg6[%c0_8, %c0_9] : memref<8x1xf32, #tpu.memory_space<vmem>>, vector<8x1xf32>
    %10 = arith.mulf %0, %0 : vector<8x32xf32>
    %cst_10 = arith.constant dense<0.000000e+00> : vector<8xf32>
    %11 = vector.multi_reduction <add>, %10, %cst_10 [1] : vector<8x32xf32> to vector<8xf32>
    %12 = vector.shape_cast %11 : vector<8xf32> to vector<8x1xf32>
    %13 = arith.addf %9, %12 : vector<8x1xf32>
    %c0_11 = arith.constant 0 : index
    %c0_12 = arith.constant 0 : index
    %14 = vector.load %arg6[%c0_11, %c0_12] : memref<8x1xf32, #tpu.memory_space<vmem>>, vector<8x1xf32>
    tpu.vector_store %arg6[%c0_11, %c0_12], %13 {strides = array<i32>} : memref<8x1xf32, #tpu.memory_space<vmem>>, vector<8x1xf32>,
    %15 = arith.mulf %1, %1 : vector<8x32xf32>
    %c0_13 = arith.constant 0 : index
    %c0_14 = arith.constant 0 : index
    %16 = vector.load %arg7[%c0_13, %c0_14] : memref<1x8xf32, #tpu.memory_space<vmem>>, vector<1x8xf32>
    %cst_15 = arith.constant 1.000000e+00 : f32
    %17 = vector.broadcast %cst_15 : f32 to vector<1x32xf32>
    %cst_16 = arith.constant dense<0.000000e+00> : vector<1x8xf32>
    %18 = tpu.matmul %17, %15, %cst_16 {dimension_numbers = #tpu.dot_dimension_numbers<[1], [1], [0], [0], [0, 0, 1, 0], [], []>} : vector<1x32xf32>, vector<8x32xf32>, vector<1x8xf32> -> vector<1x8xf32>
    %19 = arith.addf %16, %18 : vector<1x8xf32>
    %c0_17 = arith.constant 0 : index
    %c0_18 = arith.constant 0 : index
    %20 = vector.load %arg7[%c0_17, %c0_18] : memref<1x8xf32, #tpu.memory_space<vmem>>, vector<1x8xf32>
    tpu.vector_store %arg7[%c0_17, %c0_18], %19 {strides = array<i32>} : memref<1x8xf32, #tpu.memory_space<vmem>>, vector<1x8xf32>,
    %c0_i32_19 = arith.constant 0 : i32
    %21 = arith.cmpi eq, %arg1, %c0_i32_19 : i32
    %22 = arith.extui %21 : i1 to i32
    %c0_i32_20 = arith.constant 0 : i32
    %23 = arith.cmpi ne, %22, %c0_i32_20 : i32
    scf.if %23 {
      %c0_21 = arith.constant 0 : index
      %c0_22 = arith.constant 0 : index
      %24 = vector.load %arg6[%c0_21, %c0_22] : memref<8x1xf32, #tpu.memory_space<vmem>>, vector<8x1xf32>
      %25 = math.rsqrt %24 : vector<8x1xf32>
      %c0_23 = arith.constant 0 : index
      %c0_24 = arith.constant 0 : index
      %26 = vector.load %arg7[%c0_23, %c0_24] : memref<1x8xf32, #tpu.memory_space<vmem>>, vector<1x8xf32>
      %27 = math.rsqrt %26 : vector<1x8xf32>
      %c0_25 = arith.constant 0 : index
      %c0_26 = arith.constant 0 : index
      %28 = vector.load %arg5[%c0_25, %c0_26] : memref<8x8xf32, #tpu.memory_space<vmem>>, vector<8x8xf32>
      %29 = vector.broadcast %25 : vector<8x1xf32> to vector<8x8xf32>
      %30 = arith.mulf %28, %29 : vector<8x8xf32>
      %31 = vector.broadcast %27 : vector<1x8xf32> to vector<8x8xf32>
      %32 = arith.mulf %30, %31 : vector<8x8xf32>
      %33 = tpu.iota {dimensions = array<i32: 0>} : vector<8x8xi32>
      %34 = tpu.iota {dimensions = array<i32: 1>} : vector<8x8xi32>
      %c8_i32 = arith.constant 8 : i32
      %35 = arith.muli %arg0, %c8_i32 : i32
      %36 = vector.broadcast %35 : i32 to vector<8x8xi32>
      %37 = arith.addi %34, %36 : vector<8x8xi32>
      %38 = arith.cmpi eq, %33, %37 : vector<8x8xi32>
      %cst_27 = arith.constant 0.000000e+00 : f32
      %39 = vector.broadcast %cst_27 : f32 to vector<8x8xf32>
      %40 = arith.select %38, %32, %39 : vector<8x8xi1>, vector<8x8xf32>
      %cst_28 = arith.constant dense<0.000000e+00> : vector<8xf32>
      %41 = vector.multi_reduction <add>, %40, %cst_28 [0] : vector<8x8xf32> to vector<8xf32>
      %42 = vector.shape_cast %41 : vector<8xf32> to vector<1x8xf32>
      %cst_29 = arith.constant 5.000000e-01 : f32
      %43 = vector.broadcast %cst_29 : f32 to vector<1x8xf32>
      %44 = arith.mulf %43, %42 : vector<1x8xf32>
      %cst_30 = arith.constant 5.000000e-01 : f32
      %45 = vector.broadcast %cst_30 : f32 to vector<8x8xf32>
      %46 = arith.mulf %32, %45 : vector<8x8xf32>
      %47 = arith.select %38, %46, %32 : vector<8x8xi1>, vector<8x8xf32>
      %cst_31 = arith.constant 1.000000e-01 : f32
      %48 = vector.broadcast %cst_31 : f32 to vector<8x8xf32>
      %49 = arith.subf %47, %48 : vector<8x8xf32>
      %cst_32 = arith.constant 3.000000e+01 : f32
      %50 = vector.broadcast %cst_32 : f32 to vector<8x8xf32>
      %51 = arith.mulf %50, %49 : vector<8x8xf32>
      %52 = math.exp %51 : vector<8x8xf32>
      %cst_33 = arith.constant dense<0.000000e+00> : vector<8xf32>
      %53 = vector.multi_reduction <add>, %52, %cst_33 [0] : vector<8x8xf32> to vector<8xf32>
      %54 = vector.shape_cast %53 : vector<8xf32> to vector<1x8xf32>
      %cst_34 = arith.constant 1.000000e+00 : f32
      %55 = vector.broadcast %cst_34 : f32 to vector<1x8xf32>
      %56 = arith.addf %55, %54 : vector<1x8xf32>
      %57 = math.log %56 : vector<1x8xf32>
      %cst_35 = arith.constant 3.000000e+01 : f32
      %58 = vector.broadcast %cst_35 : f32 to vector<1x8xf32>
      %59 = arith.divf %57, %58 : vector<1x8xf32>
      %cst_36 = arith.constant 0.000000e+00 : f32
      %60 = vector.broadcast %cst_36 : f32 to vector<1x8xf32>
      %61 = arith.maximumf %44, %60 : vector<1x8xf32>
      %cst_37 = arith.constant 1.000000e+00 : f32
      %62 = vector.broadcast %cst_37 : f32 to vector<1x8xf32>
      %63 = arith.addf %62, %61 : vector<1x8xf32>
      %64 = math.log %63 : vector<1x8xf32>
      %65 = arith.subf %59, %64 : vector<1x8xf32>
      %c0_38 = arith.constant 0 : index
      %c0_39 = arith.constant 0 : index
      %66 = vector.load %arg4[%c0_38, %c0_39] : memref<1x8xf32, #tpu.memory_space<vmem>>, vector<1x8xf32>
      tpu.vector_store %arg4[%c0_38, %c0_39], %65 {strides = array<i32>} : memref<1x8xf32, #tpu.memory_space<vmem>>, vector<1x8xf32>,
    } else {
    }
    return
  }
  func.func @transform_0(%arg0: i32, %arg1: i32) -> (i32, i32) {
    %c0_i32 = arith.constant 0 : i32
    %c0_i32_0 = arith.constant 0 : i32
    return %c0_i32, %arg1 : i32, i32
  }
  func.func @transform_1(%arg0: i32, %arg1: i32) -> (i32, i32) {
    %c0_i32 = arith.constant 0 : i32
    return %arg0, %arg1 : i32, i32
  }
  func.func @transform_2(%arg0: i32, %arg1: i32) -> (i32, i32) {
    %c0_i32 = arith.constant 0 : i32
    %c0_i32_0 = arith.constant 0 : i32
    return %c0_i32, %arg0 : i32, i32
  }
}

</mosaic_0001>

<llo_original>
// kernel: tpu_custom_call.1
$region0: #{tpu_custom_call.1}
  #allocation0 [shape = 'u32[]', space=smem, size = 0x4, offset = 0x4, fixed_abs, tag = 'smem constant byte address 0x4 - core index']
  #allocation1 [shape = 'u32[144,128]{1,0:T(1,128)}', space=vmem, size = 0x12000, scoped, tag = 'internal scratch']
  #allocation2 [shape = 'f32[8,8]{1,0:T(8,128)}', space=vmem, size = 0x1000, scoped, tag = 'scratch operand']
  #allocation3 [shape = 'f32[8,1]{1,0:T(8,128)}', space=vmem, size = 0x1000, scoped, tag = 'scratch operand']
  #allocation4 [shape = 'f32[1,8]{1,0:T(1,128)}', space=vmem, size = 0x200, scoped, tag = 'scratch operand']
  %s0 = inlined_call_operand.hbm [shape: f32[8,32], index: 0, kind: input, shape index: {}]
  %s1 = inlined_call_operand.hbm [shape: f32[8,32], index: 1, kind: input, shape index: {}]
  %s2 = inlined_call_operand.hbm [shape: f32[1,8], index: 2, kind: output, shape index: {}]
  %s3 = sld [smem:[#allocation0]]
  $region34: #{tpu_custom_call.1} parent=0
    _
  %s5 = ssub.s32 1, %s3
  %s6 = scalar_select 0, %s5, %s3
  $region1: #{tpu_custom_call.1} parent=0
    #allocation5 [shape = 'u8[4096]{0}', space=vmem, size = 0x1000, scoped, tag = 'input window, operand 0, single buffered']
    #allocation6 [shape = 's32[1]{0}', space=sflag, size = 0x4, scoped, tag = 'scoped memory for tpu_custom_call.1']
    #allocation7 [shape = 's32[1]{0}', space=sflag, size = 0x4, scoped, tag = 'scoped memory for tpu_custom_call.1']
    #allocation8 [shape = 'u8[4096]{0}', space=vmem, size = 0x1000, scoped, tag = 'input window, operand 1, single buffered']
    #allocation9 [shape = 's32[1]{0}', space=sflag, size = 0x4, scoped, tag = 'scoped memory for tpu_custom_call.1']
    #allocation10 [shape = 'u8[512]{0}', space=vmem, size = 0x400, scoped, tag = 'output window, operand 0, single buffered']
    %7 = vsyncpa [#allocation6], 0
    %8 = vsyncpa [#allocation9], 0
    %9 = vsyncpa [#allocation7], 0
    // Predicated region
    $region2: #{tpu_custom_call.1} parent=1 // pred_check
      _
    $region3: #{tpu_custom_call.1} parent=1 // pred_check_branch
      %11 = sbr.rel (0) target = $region5
    $region4: #{tpu_custom_call.1} parent=1 // pred_region
      %s13 = ssub.s32 128, 128
      %14 = vsyncadd [#allocation6], %s13
      %s16 = sshll.u32 [#allocation5], 4
      %s17 = int_to_ptr.vmem [resolvable:$true] %s16
      %19 = dma.hbm_to_vmem [thread:$0]  %s0, 128, %s17, [#allocation6]
    $region5: #{tpu_custom_call.1} parent=1 // pred_fallthru
      _
    // Predicated region
    $region6: #{tpu_custom_call.1} parent=1 // pred_check
      _
    $region7: #{tpu_custom_call.1} parent=1 // pred_check_branch
      %21 = sbr.rel (0) target = $region9
    $region8: #{tpu_custom_call.1} parent=1 // pred_region
      %s23 = ssub.s32 128, 128
      %24 = vsyncadd [#allocation9], %s23
      %s26 = sshll.u32 [#allocation8], 4
      %s27 = int_to_ptr.vmem [resolvable:$true] %s26
      %29 = dma.hbm_to_vmem [thread:$0]  %s1, 128, %s27, [#allocation9]
    $region9: #{tpu_custom_call.1} parent=1 // pred_fallthru
      _
    // Predicated region
    $region10: #{tpu_custom_call.1} parent=1 // pred_check
      _
    $region11: #{tpu_custom_call.1} parent=1 // pred_check_branch
      %31 = sbr.rel (0) target = $region13
    $region12: #{tpu_custom_call.1} parent=1 // pred_region
      %32 = dma.done [#allocation6], 128
    $region13: #{tpu_custom_call.1} parent=1 // pred_fallthru
      _
    // Predicated region
    $region14: #{tpu_custom_call.1} parent=1 // pred_check
      _
    $region15: #{tpu_custom_call.1} parent=1 // pred_check_branch
      %34 = sbr.rel (0) target = $region17
    $region16: #{tpu_custom_call.1} parent=1 // pred_region
      %35 = dma.done [#allocation9], 128
    $region17: #{tpu_custom_call.1} parent=1 // pred_fallthru
      _
    %v36 = vld [vmem:[#allocation5] sm:$0xff]
    %v37 = vld [vmem:[#allocation8] sm:$0xff]
    %p38 = scmp.eq.s32.totalorder 0, 0
    // Predicated region
    $region18: #{tpu_custom_call.1} parent=1 // pred_check
      %p39 = pneg %p38
    $region19: #{tpu_custom_call.1} parent=1 // pred_check_branch
      %41 = sbr.rel (%p39) target = $region21
    $region20: #{tpu_custom_call.1} parent=1 // pred_region
      %vm42 = vcmask 64512
      %43 = vst.msk [vmem:[#allocation2] sm:$0xff] %vm42, 0.0
      %vm44 = vcmask 7168
      %45 = vst.msk [vmem:[#allocation3] sm:$0xff] %vm44, 0.0
      %vm46 = vcmask 57344
      %47 = vst.msk [vmem:[#allocation4] sm:$0x1] %vm46, 0.0
    $region21: #{tpu_custom_call.1} parent=1 // pred_fallthru
      _
    %v48 = vld [vmem:[#allocation2] sm:$0xff]
    %vm49 = vcmask 261120
    %v51 = vsel %vm49, %v36, 0
    %v54 = vsel %vm49, %v37, 0
    %56 = vmatprep.subr.mxu0 0.0
    %57 = vmatpush1.xpose.msra.mxu0 %v54
    %58 = vmatprep.subr.mxu0 0.0
    %59 = vmatpush1.xpose.msra.mxu0 0.0
    %60 = vmatprep.subr.mxu0 0.0
    %61 = vmatpush1.xpose.msra.mxu0 0.0
    %62 = vmatprep.subr.mxu0 0.0
    %63 = vmatpush1.xpose.msra.mxu0 0.0
    %64 = vmatprep.subr.mxu0 0.0
    %65 = vmatpush1.xpose.msra.mxu0 0.0
    %66 = vmatprep.subr.mxu0 0.0
    %67 = vmatpush1.xpose.msra.mxu0 0.0
    %68 = vmatprep.subr.mxu0 0.0
    %69 = vmatpush1.xpose.msra.mxu0 0.0
    %70 = vmatprep.subr.mxu0 0.0
    %71 = vmatpush1.xpose.msra.mxu0 0.0
    %72 = vmatprep.subr.mxu0 0.0
    %73 = vmatpush1.xpose.msra.mxu0 0.0
    %74 = vmatprep.subr.mxu0 0.0
    %75 = vmatpush1.xpose.msra.mxu0 0.0
    %76 = vmatprep.subr.mxu0 0.0
    %77 = vmatpush1.xpose.msra.mxu0 0.0
    %78 = vmatprep.subr.mxu0 0.0
    %79 = vmatpush1.xpose.msra.mxu0 0.0
    %80 = vmatprep.subr.mxu0 0.0
    %81 = vmatpush1.xpose.msra.mxu0 0.0
    %82 = vmatprep.subr.mxu0 0.0
    %83 = vmatpush1.xpose.msra.mxu0 0.0
    %84 = vmatprep.subr.mxu0 0.0
    %85 = vmatpush1.xpose.msra.mxu0 0.0
    %86 = vmatprep.subr.mxu0 0.0
    %87 = vmatpush1.xpose.msra.mxu0 0.0
    %88 = vmatprep.subr.mxu0 0.0
    %89 = vmatpush1.xpose.msra.mxu0 0.0
    %90 = vmatprep.subr.mxu0 0.0
    %91 = vmatpush1.xpose.msra.mxu0 0.0
    %92 = vmatprep.subr.mxu0 0.0
    %93 = vmatpush1.xpose.msra.mxu0 0.0
    %94 = vmatprep.subr.mxu0 0.0
    %95 = vmatpush1.xpose.msra.mxu0 0.0
    %96 = vmatprep.subr.mxu0 0.0
    %97 = vmatpush1.xpose.msra.mxu0 0.0
    %98 = vmatprep.subr.mxu0 0.0
    %99 = vmatpush1.xpose.msra.mxu0 0.0
    %100 = vmatprep.subr.mxu0 0.0
    %101 = vmatpush1.xpose.msra.mxu0 0.0
    %102 = vmatprep.subr.mxu0 0.0
    %103 = vmatpush1.xpose.msra.mxu0 0.0
    %104 = vmatprep.subr.mxu0 0.0
    %105 = vmatpush1.xpose.msra.mxu0 0.0
    %106 = vmatprep.subr.mxu0 0.0
    %107 = vmatpush1.xpose.msra.mxu0 0.0
    %108 = vmatprep.subr.mxu0 0.0
    %109 = vmatpush1.xpose.msra.mxu0 0.0
    %110 = vmatprep.subr.mxu0 0.0
    %111 = vmatpush1.xpose.msra.mxu0 0.0
    %112 = vmatprep.subr.mxu0 0.0
    %113 = vmatpush1.xpose.msra.mxu0 0.0
    %114 = vmatprep.subr.mxu0 0.0
    %115 = vmatpush1.xpose.msra.mxu0 0.0
    %116 = vmatprep.subr.mxu0 0.0
    %117 = vmatpush1.xpose.msra.mxu0 0.0
    %118 = vmatprep.subr.mxu0 0.0
    %119 = vmatpush1.xpose.msra.mxu0 0.0
    %120 = vmatprep.mubr.f32.mxu0 0.0
    %121 = vmatmul.mubr.f32.gmra.mrb[0].mxu0 %v51
    %v122 = vpop.f32.mrb[0].mxu0
    %v123 = vadd.f32 0.0, %v122
    %v124 = vpop.f32.mrb[0].mxu0
    %125 = vdwg.mxu0
    %v126 = vadd.f32 %v48, %v123
    %vm127 = vcmask 64512
    %128 = vst.msk [vmem:[#allocation2] sm:$0xff] %vm127, %v126
    %v129 = vld [vmem:[#allocation3] sm:$0xff]
    %v130 = vmul.f32 %v36, %v36
    %v131 = vsel %vm49, %v130, 0.0
    %132 = vadd.xlane.f32.xlu0 %v131
    %v133 = vpop.xlane.xlu0 %132
    %v134 = vadd.f32 %v129, %v133
    %vm135 = vcmask 7168
    %136 = vst.msk [vmem:[#allocation3] sm:$0xff] %vm135, %v134
    %v137 = vmul.f32 %v37, %v37
    %v138 = vld [vmem:[#allocation4] sm:$0x1]
    %v140 = vsel %vm49, 1.0, 0
    %v143 = vsel %vm49, %v137, 0
    %145 = vmatprep.subr.mxu0 0.0
    %146 = vmatpush1.xpose.msra.mxu0 %v143
    %147 = vmatprep.subr.mxu0 0.0
    %148 = vmatpush1.xpose.msra.mxu0 0.0
    %149 = vmatprep.subr.mxu0 0.0
    %150 = vmatpush1.xpose.msra.mxu0 0.0
    %151 = vmatprep.subr.mxu0 0.0
    %152 = vmatpush1.xpose.msra.mxu0 0.0
    %153 = vmatprep.subr.mxu0 0.0
    %154 = vmatpush1.xpose.msra.mxu0 0.0
    %155 = vmatprep.subr.mxu0 0.0
    %156 = vmatpush1.xpose.msra.mxu0 0.0
    %157 = vmatprep.subr.mxu0 0.0
    %158 = vmatpush1.xpose.msra.mxu0 0.0
    %159 = vmatprep.subr.mxu0 0.0
    %160 = vmatpush1.xpose.msra.mxu0 0.0
    %161 = vmatprep.subr.mxu0 0.0
    %162 = vmatpush1.xpose.msra.mxu0 0.0
    %163 = vmatprep.subr.mxu0 0.0
    %164 = vmatpush1.xpose.msra.mxu0 0.0
    %165 = vmatprep.subr.mxu0 0.0
    %166 = vmatpush1.xpose.msra.mxu0 0.0
    %167 = vmatprep.subr.mxu0 0.0
    %168 = vmatpush1.xpose.msra.mxu0 0.0
    %169 = vmatprep.subr.mxu0 0.0
    %170 = vmatpush1.xpose.msra.mxu0 0.0
    %171 = vmatprep.subr.mxu0 0.0
    %172 = vmatpush1.xpose.msra.mxu0 0.0
    %173 = vmatprep.subr.mxu0 0.0
    %174 = vmatpush1.xpose.msra.mxu0 0.0
    %175 = vmatprep.subr.mxu0 0.0
    %176 = vmatpush1.xpose.msra.mxu0 0.0
    %177 = vmatprep.subr.mxu0 0.0
    %178 = vmatpush1.xpose.msra.mxu0 0.0
    %179 = vmatprep.subr.mxu0 0.0
    %180 = vmatpush1.xpose.msra.mxu0 0.0
    %181 = vmatprep.subr.mxu0 0.0
    %182 = vmatpush1.xpose.msra.mxu0 0.0
    %183 = vmatprep.subr.mxu0 0.0
    %184 = vmatpush1.xpose.msra.mxu0 0.0
    %185 = vmatprep.subr.mxu0 0.0
    %186 = vmatpush1.xpose.msra.mxu0 0.0
    %187 = vmatprep.subr.mxu0 0.0
    %188 = vmatpush1.xpose.msra.mxu0 0.0
    %189 = vmatprep.subr.mxu0 0.0
    %190 = vmatpush1.xpose.msra.mxu0 0.0
    %191 = vmatprep.subr.mxu0 0.0
    %192 = vmatpush1.xpose.msra.mxu0 0.0
    %193 = vmatprep.subr.mxu0 0.0
    %194 = vmatpush1.xpose.msra.mxu0 0.0
    %195 = vmatprep.subr.mxu0 0.0
    %196 = vmatpush1.xpose.msra.mxu0 0.0
    %197 = vmatprep.subr.mxu0 0.0
    %198 = vmatpush1.xpose.msra.mxu0 0.0
    %199 = vmatprep.subr.mxu0 0.0
    %200 = vmatpush1.xpose.msra.mxu0 0.0
    %201 = vmatprep.subr.mxu0 0.0
    %202 = vmatpush1.xpose.msra.mxu0 0.0
    %203 = vmatprep.subr.mxu0 0.0
    %204 = vmatpush1.xpose.msra.mxu0 0.0
    %205 = vmatprep.subr.mxu0 0.0
    %206 = vmatpush1.xpose.msra.mxu0 0.0
    %207 = vmatprep.subr.mxu0 0.0
    %208 = vmatpush1.xpose.msra.mxu0 0.0
    %209 = vmatprep.mubr.f32.mxu0 0.0
    %210 = vmatmul.mubr.f32.gmra.mrb[0].mxu0 %v140
    %v211 = vpop.f32.mrb[0].mxu0
    %v212 = vadd.f32 0.0, %v211
    %v213 = vpop.f32.mrb[0].mxu0
    %214 = vdwg.mxu0
    %v215 = vadd.f32 %v138, %v212
    %vm216 = vcmask 57344
    %217 = vst.msk [vmem:[#allocation4] sm:$0x1] %vm216, %v215
    // Predicated region
    $region22: #{tpu_custom_call.1} parent=1 // pred_check
      %p218 = pneg %p38
    $region23: #{tpu_custom_call.1} parent=1 // pred_check_branch
      %220 = sbr.rel (%p218) target = $region25
    $region24: #{tpu_custom_call.1} parent=1 // pred_region
      %v221 = vld [vmem:[#allocation3] sm:$0xff]
      %v222 = vrsqrt.pop %v221
      %v223 = vld [vmem:[#allocation4] sm:$0x1]
      %v224 = vrsqrt.pop %v223
      %v225 = vld [vmem:[#allocation2] sm:$0xff]
      %227 = vset.pattern.permute.xlu0 0
      %228 = vperm.xlu0 %227, %v222
      %v229 = vpop.permute.xlu0 %228
      %v231 = vmul.f32 %v225, %v229
      %v233 = vlaneseq
      %v234 = vshrl.u32 %v233, 7
      %v235 = vsub.s32 0, %v234
      %v236 = vrot.slane %v224, %v235
      %v238 = vmul.f32 %v231, %v236
      %v239 = vlaneseq
      %v240 = vshrl.u32 %v239, 7
      %v241 = vlaneseq
      %v242 = vand.u32 %v241, 127
      %s243 = smul.u32 0, 8
      %v244 = vstv %s243
      %v245 = vadd.s32 %v242, %v244
      %vm246 = vcmp.eq.s32.totalorder %v240, %v245
      %v247 = vsel %vm246, %v238, 0.0
      %v248 = vsel %vm127, %v247, 0.0
      %v249 = vrot.slane %v248, 4
      %v250 = vadd.f32 %v248, %v249
      %v251 = vrot.slane %v250, 2
      %v252 = vadd.f32 %v250, %v251
      %v253 = vrot.slane %v252, 1
      %v254 = vadd.f32 %v252, %v253
      %v255 = vmul.f32 %v254, 0.5
      %v256 = vmul.f32 %v238, 0.5
      %v257 = vsel %vm246, %v256, %v238
      %v258 = vsub.f32 %v257, 0.1
      %v259 = vmul.f32 %v258, 30.0
      %v260 = vmul.f32 %v259, 1.442695
      %v261 = vpow.pop %v260
      %v262 = vsel %vm127, %v261, 0.0
      %v263 = vrot.slane %v262, 4
      %v264 = vadd.f32 %v262, %v263
      %v265 = vrot.slane %v264, 2
      %v266 = vadd.f32 %v264, %v265
      %v267 = vrot.slane %v266, 1
      %v268 = vadd.f32 %v266, %v267
      %v269 = vadd.f32 %v268, 1.0
      %v270 = vlog2.pop %v269
      %v271 = vmul.f32 %v270, 0.6931472
      %v272 = vrcp.pop 30.0
      %v273 = vmul.f32 %v271, %v272
      %v274 = vmax.f32 %v255, 0.0
      %v275 = vadd.f32 %v274, 1.0
      %v276 = vlog2.pop %v275
      %v277 = vmul.f32 %v276, 0.6931472
      %v278 = vsub.f32 %v273, %v277
      %279 = vst.msk [vmem:[#allocation10] sm:$0x1] %vm216, %v278
    $region25: #{tpu_custom_call.1} parent=1 // pred_fallthru
      _
    // Predicated region
    $region26: #{tpu_custom_call.1} parent=1 // pred_check
      _
    $region27: #{tpu_custom_call.1} parent=1 // pred_check_branch
      %281 = sbr.rel (0) target = $region29
    $region28: #{tpu_custom_call.1} parent=1 // pred_region
      %s283 = ssub.s32 16, 16
      %284 = vsyncadd [#allocation7], %s283
      %s286 = sshll.u32 [#allocation10], 4
      %s287 = int_to_ptr.vmem [resolvable:$true] %s286
      %289 = dma.vmem_to_hbm [thread:$0]  %s287, 16, %s2, [#allocation7]
    $region29: #{tpu_custom_call.1} parent=1 // pred_fallthru
      _
    // Predicated region
    $region30: #{tpu_custom_call.1} parent=1 // pred_check
      _
    $region31: #{tpu_custom_call.1} parent=1 // pred_check_branch
      %291 = sbr.rel (0) target = $region33
    $region32: #{tpu_custom_call.1} parent=1 // pred_region
      %292 = dma.done [#allocation7], 16
    $region33: #{tpu_custom_call.1} parent=1 // pred_fallthru
      _
    %293 = vsyncpa [#allocation6], 1
    %294 = vsyncpa [#allocation9], 1
    %295 = vsyncpa [#allocation7], 1

</llo_original>
